<compile_context>
chip_gen: v6e
topology: v6e:2x2x1
jax: 0.10.0
libtpu: 0.0.40
codegen_flags: <defaults>
</compile_context>

<pallas_src>
import jax
import jax.numpy as jnp
from jax.experimental import pallas as pl
from jax.experimental.pallas import tpu as pltpu


def hamiltonian_kernel(dx_ref, u_ref, coef_ref, du_dt_ref, h_ref):
    """One grid step == one block of TB batch rows, flat (nx*c) lane-dense layout.

    dx_ref    : (TB, 1)        VMEM  per-batch grid spacing
    u_ref     : (TB, nx*c)     VMEM  nodal values, native row-major flattening
    coef_ref  : (2c-1, nx*c)   VMEM  per-lane contraction coefficients (resident)
    du_dt_ref : (TB, nx*c)     VMEM  output du/dt (same flat layout)
    h_ref     : (TB, 1)        VMEM  output Hamiltonian per batch element
    """
    tb, flat = u_ref.shape
    c = (coef_ref.shape[0] + 1) // 2

    if flat % 128 == 0:
        # circular shift on the lane axis: y[p] = x[(p + s) mod flat]
        # lane rotations run on the XLU slot -- cheap next to the VPU work
        def cshift(x, s):
            return pltpu.roll(x, (-s) % flat, axis=1)
    else:
        # correctness fallback for lane-misaligned flat widths (slower)
        def cshift(x, s):
            s = s % flat
            if s == 0:
                return x
            return jnp.concatenate([x[:, s:], x[:, :s]], axis=1)

    # f32 compute (v5e has no bf16 VALU); single load of the block.
    u = u_ref[...].astype(jnp.float32)
    coef = coef_ref[...]                                    # tiny (2c-1, flat)

    # dH/du in flat layout:
    #   g[p] = sum_{s=-(c-1)}^{c-1} coef[s+c-1, p] * u[p+s]
    # coef masks out shifts that would cross a spatial point's channel group,
    # so the circular wrap of the roll never leaks into valid positions.
    g = coef[c - 1] * u                                     # s = 0 term
    for s in range(1, c):
        g = g + coef[c - 1 + s] * cshift(u, s)
        g = g + coef[c - 1 - s] * cshift(u, -s)

    # Hamiltonian: single lane reduction per block (keeps XLU pressure low).
    h_ref[...] = 0.5 * jnp.sum(u * g, axis=-1, keepdims=True)

    # Poisson bracket: 2nd-order central difference, periodic BC.  A shift of
    # +-c flat positions is exactly +-1 spatial point; the flat-axis circular
    # wrap is the correct periodic spatial wrap.
    inv_2dx = 0.5 / dx_ref[...].astype(jnp.float32)          # (TB, 1), once/block
    du_dt_ref[...] = ((cshift(g, c) - cshift(g, -c)) * inv_2dx).astype(du_dt_ref.dtype)


def _generation_budget():
    """(target block bytes, vmem_limit_bytes), aware of 64 MiB VMEM on v7x."""
    try:
        cap = getattr(pltpu.get_tpu_info(), "vmem_capacity_bytes", None)
    except Exception:  # interpret mode / older runtimes
        cap = None
    if cap is None:
        cap = 64 * 1024 * 1024                    # conservative (v7x-sized)
    if cap >= 100 * 1024 * 1024:                  # v5e / v6e: 128 MiB physical
        return 8 * 1024 * 1024, 80 * 1024 * 1024
    return 4 * 1024 * 1024, 44 * 1024 * 1024      # v7x: leave headroom


def _choose_batch_block(b, flat, *, target_bytes, min_blocks=2):
    """Batch rows per grid step, chosen WITHOUT padding:

    * tb divides b (no jnp.pad copy, no ragged tail),
    * tb % 8 == 0 or tb == b  (keeps the (tb, 1) dx/H blocks layout-legal),
    * prefer >= min_blocks grid steps (shards across v7x's two TensorCores),
    * then maximize block size under the per-generation byte target.
    """
    per_batch = flat * 4                          # f32 compute footprint
    divs = [d for d in range(1, b + 1) if b % d == 0 and (d % 8 == 0 or d == b)]
    fit = [d for d in divs if d * per_batch <= target_bytes]
    if not fit:
        # TODO(synk): pathological b (huge prime batch) would need a ragged tail
        fit = [min(divs)]
    multi = [d for d in fit if b // d >= min_blocks]
    return max(multi) if multi else max(fit)


def hamiltonian_wrapper_forward(u, x, a_sym, *, return_H=True):
    """Pallas equivalent of Hamiltonian_Wrapper.forward(u, x, return_H=True)
    for the 1-D PDE branch (kdv / burgers / advection)."""
    b, nx, c = u.shape
    flat = nx * c
    out_dtype = u.dtype

    # dx = x[:, 1] - x[:, 0]  (per batch), as in the torch code
    dx = (x[:, 1, 0] - x[:, 0, 0]).astype(jnp.float32)[:, None]          # (b, 1)

    # zero-cost layout change: (b, nx, c) row-major == (b, nx*c).  No transpose,
    # no extra HBM pass.
    u_flat = u.reshape(b, flat)

    # Per-lane contraction coefficients (tiny, computed once per call):
    #   coef[s + c - 1, p] = A[p % c, p % c + s]  if 0 <= p % c + s < c else 0
    i_idx = jnp.arange(flat, dtype=jnp.int32) % c
    shifts = jnp.arange(-(c - 1), c, dtype=jnp.int32)
    d_idx = i_idx[None, :] + shifts[:, None]                              # (2c-1, flat)
    valid = (d_idx >= 0) & (d_idx < c)
    coef = jnp.where(
        valid,
        a_sym.astype(jnp.float32)[i_idx[None, :], jnp.clip(d_idx, 0, c - 1)],
        0.0,
    )                                                                     # (2c-1, flat)

    target_bytes, vmem_limit = _generation_budget()
    tb = _choose_batch_block(b, flat, target_bytes=target_bytes)
    num_blocks = b // tb

    grid_spec = pltpu.PrefetchScalarGridSpec(
        num_scalar_prefetch=0,
        grid=(num_blocks,),
        in_specs=[
            pl.BlockSpec((tb, 1), lambda i: (i, 0)),                      # dx
            pl.BlockSpec((tb, flat), lambda i: (i, 0)),                   # u (flat, lane-dense)
            pl.BlockSpec((2 * c - 1, flat), lambda i: (0, 0)),            # coef (resident)
        ],
        out_specs=[
            pl.BlockSpec((tb, flat), lambda i: (i, 0)),                   # du_dt (flat)
            pl.BlockSpec((tb, 1), lambda i: (i, 0)),                      # H (own block)
        ],
    )

    du_dt_flat, H = pl.pallas_call(
        hamiltonian_kernel,
        out_shape=(
            jax.ShapeDtypeStruct((b, flat), out_dtype),
            jax.ShapeDtypeStruct((b, 1), jnp.float32),
        ),
        grid_spec=grid_spec,
        compiler_params=pltpu.CompilerParams(
            # no cross-step dependency -> batch axis shards across v7x's two
            # TensorCores (harmless on single-TC v5e/v6e)
            dimension_semantics=("parallel",),
            vmem_limit_bytes=vmem_limit,
        ),
    )(dx, u_flat, coef)

    du_dt = du_dt_flat.reshape(b, nx, c)                                  # zero-cost
    if return_H:
        return du_dt, H
    return du_dt


def reference_forward(u, x, a_sym):
    """Pure-JAX reference (mirrors the PyTorch semantics)."""
    g = jnp.einsum("bnc,cd->bnd", u, a_sym)                   # dH/du
    H = 0.5 * jnp.sum(u * g, axis=(1, 2))[:, None]            # (b, 1)
    dx = (x[:, 1, :] - x[:, 0, :])[:, :, None]                # (b, 1, 1)
    g_next = jnp.roll(g, -1, axis=1)
    g_prev = jnp.roll(g, 1, axis=1)
    du_dt = (g_next - g_prev) / (2.0 * dx)
    return du_dt, H


if __name__ == "__main__":
    b, nx, c = 2, 128, 4     # nx*c = 512 -> lane-dense flat axis

    key = jax.random.PRNGKey(0)
    k_u, k_a = jax.random.split(key)

    # nodal values u: (b, nx, c)
    u = jax.random.normal(k_u, (b, nx, c), dtype=jnp.float32)

    # coordinates x: (b, nx, 1), uniform grid with a different dx per batch
    dx_per_batch = jnp.array([0.1, 0.125], dtype=jnp.float32)
    x = (jnp.arange(nx, dtype=jnp.float32)[None, :, None]
         * dx_per_batch[:, None, None])                        # (b, nx, 1)

    # deterministic symmetric Hamiltonian weight A_sym: (c, c)
    a_raw = jax.random.normal(k_a, (c, c), dtype=jnp.float32)
    a_sym = 0.5 * (a_raw + a_raw.T)

    du_dt, H = hamiltonian_wrapper_forward(u, x, a_sym, return_H=True)
    jax.block_until_ready((du_dt, H))

    du_dt_ref, H_ref = reference_forward(u, x, a_sym)
    assert du_dt.shape == (b, nx, c) and H.shape == (b, 1)
    assert jnp.allclose(du_dt, du_dt_ref, rtol=1e-4, atol=1e-4)
    assert jnp.allclose(H, H_ref, rtol=1e-4, atol=1e-4)

    print("KERNEL_OK")
</pallas_src>

<mosaic_0001>
module attributes {stable_mosaic.version = 11 : i64} {
  func.func @hamiltonian_kernel(%arg0: i32, %arg1: memref<2x1xf32, #tpu.memory_space<vmem>>, %arg2: memref<2x512xf32, #tpu.memory_space<vmem>>, %arg3: memref<7x512xf32, #tpu.memory_space<vmem>>, %arg4: memref<2x512xf32, #tpu.memory_space<vmem>>, %arg5: memref<2x1xf32, #tpu.memory_space<vmem>>) attributes {dimension_semantics = [#tpu.dimension_semantics<parallel>], iteration_bounds = array<i64: 1>, scalar_prefetch = 0 : i64, scratch_operands = 0 : i64, tpu.core_type = #tpu.core_type<tc>, window_params = [{transform_indices = @transform_0, window_bounds = array<i64: 2, 1>}, {transform_indices = @transform_1, window_bounds = array<i64: 2, 512>}, {pipeline_mode = #tpu.pipeline_mode<synchronous>, transform_indices = @transform_2, window_bounds = array<i64: 7, 512>}, {transform_indices = @transform_3, window_bounds = array<i64: 2, 512>}, {transform_indices = @transform_4, window_bounds = array<i64: 2, 1>}]} {
    %c0 = arith.constant 0 : index
    %c0_0 = arith.constant 0 : index
    %0 = vector.load %arg2[%c0, %c0_0] : memref<2x512xf32, #tpu.memory_space<vmem>>, vector<2x512xf32>
    %c0_1 = arith.constant 0 : index
    %c0_2 = arith.constant 0 : index
    %1 = vector.load %arg3[%c0_1, %c0_2] : memref<7x512xf32, #tpu.memory_space<vmem>>, vector<7x512xf32>
    %2 = vector.extract_strided_slice %1 {offsets = [3, 0], sizes = [1, 512], strides = [1, 1]} : vector<7x512xf32> to vector<1x512xf32>
    %3 = vector.shape_cast %2 : vector<1x512xf32> to vector<512xf32>
    %4 = vector.shape_cast %3 : vector<512xf32> to vector<1x512xf32>
    %5 = vector.broadcast %4 : vector<1x512xf32> to vector<2x512xf32>
    %6 = arith.mulf %5, %0 : vector<2x512xf32>
    %7 = vector.extract_strided_slice %1 {offsets = [4, 0], sizes = [1, 512], strides = [1, 1]} : vector<7x512xf32> to vector<1x512xf32>
    %8 = vector.shape_cast %7 : vector<1x512xf32> to vector<512xf32>
    %c511_i32 = arith.constant 511 : i32
    %9 = tpu.dynamic_rotate %0 by %c511_i32 dim 1 : vector<2x512xf32>, i32 -> vector<2x512xf32>
    %10 = vector.shape_cast %8 : vector<512xf32> to vector<1x512xf32>
    %11 = vector.broadcast %10 : vector<1x512xf32> to vector<2x512xf32>
    %12 = arith.mulf %11, %9 : vector<2x512xf32>
    %13 = arith.addf %6, %12 : vector<2x512xf32>
    %14 = vector.extract_strided_slice %1 {offsets = [2, 0], sizes = [1, 512], strides = [1, 1]} : vector<7x512xf32> to vector<1x512xf32>
    %15 = vector.shape_cast %14 : vector<1x512xf32> to vector<512xf32>
    %c1_i32 = arith.constant 1 : i32
    %16 = tpu.dynamic_rotate %0 by %c1_i32 dim 1 : vector<2x512xf32>, i32 -> vector<2x512xf32>
    %17 = vector.shape_cast %15 : vector<512xf32> to vector<1x512xf32>
    %18 = vector.broadcast %17 : vector<1x512xf32> to vector<2x512xf32>
    %19 = arith.mulf %18, %16 : vector<2x512xf32>
    %20 = arith.addf %13, %19 : vector<2x512xf32>
    %21 = vector.extract_strided_slice %1 {offsets = [5, 0], sizes = [1, 512], strides = [1, 1]} : vector<7x512xf32> to vector<1x512xf32>
    %22 = vector.shape_cast %21 : vector<1x512xf32> to vector<512xf32>
    %c510_i32 = arith.constant 510 : i32
    %23 = tpu.dynamic_rotate %0 by %c510_i32 dim 1 : vector<2x512xf32>, i32 -> vector<2x512xf32>
    %24 = vector.shape_cast %22 : vector<512xf32> to vector<1x512xf32>
    %25 = vector.broadcast %24 : vector<1x512xf32> to vector<2x512xf32>
    %26 = arith.mulf %25, %23 : vector<2x512xf32>
    %27 = arith.addf %20, %26 : vector<2x512xf32>
    %28 = vector.extract_strided_slice %1 {offsets = [1, 0], sizes = [1, 512], strides = [1, 1]} : vector<7x512xf32> to vector<1x512xf32>
    %29 = vector.shape_cast %28 : vector<1x512xf32> to vector<512xf32>
    %c2_i32 = arith.constant 2 : i32
    %30 = tpu.dynamic_rotate %0 by %c2_i32 dim 1 : vector<2x512xf32>, i32 -> vector<2x512xf32>
    %31 = vector.shape_cast %29 : vector<512xf32> to vector<1x512xf32>
    %32 = vector.broadcast %31 : vector<1x512xf32> to vector<2x512xf32>
    %33 = arith.mulf %32, %30 : vector<2x512xf32>
    %34 = arith.addf %27, %33 : vector<2x512xf32>
    %35 = vector.extract_strided_slice %1 {offsets = [6, 0], sizes = [1, 512], strides = [1, 1]} : vector<7x512xf32> to vector<1x512xf32>
    %36 = vector.shape_cast %35 : vector<1x512xf32> to vector<512xf32>
    %c509_i32 = arith.constant 509 : i32
    %37 = tpu.dynamic_rotate %0 by %c509_i32 dim 1 : vector<2x512xf32>, i32 -> vector<2x512xf32>
    %38 = vector.shape_cast %36 : vector<512xf32> to vector<1x512xf32>
    %39 = vector.broadcast %38 : vector<1x512xf32> to vector<2x512xf32>
    %40 = arith.mulf %39, %37 : vector<2x512xf32>
    %41 = arith.addf %34, %40 : vector<2x512xf32>
    %42 = vector.extract_strided_slice %1 {offsets = [0, 0], sizes = [1, 512], strides = [1, 1]} : vector<7x512xf32> to vector<1x512xf32>
    %43 = vector.shape_cast %42 : vector<1x512xf32> to vector<512xf32>
    %c3_i32 = arith.constant 3 : i32
    %44 = tpu.dynamic_rotate %0 by %c3_i32 dim 1 : vector<2x512xf32>, i32 -> vector<2x512xf32>
    %45 = vector.shape_cast %43 : vector<512xf32> to vector<1x512xf32>
    %46 = vector.broadcast %45 : vector<1x512xf32> to vector<2x512xf32>
    %47 = arith.mulf %46, %44 : vector<2x512xf32>
    %48 = arith.addf %41, %47 : vector<2x512xf32>
    %49 = arith.mulf %0, %48 : vector<2x512xf32>
    %cst = arith.constant dense<0.000000e+00> : vector<2xf32>
    %50 = vector.multi_reduction <add>, %49, %cst [1] : vector<2x512xf32> to vector<2xf32>
    %51 = vector.shape_cast %50 : vector<2xf32> to vector<2x1xf32>
    %cst_3 = arith.constant 5.000000e-01 : f32
    %52 = vector.broadcast %cst_3 : f32 to vector<2x1xf32>
    %53 = arith.mulf %52, %51 : vector<2x1xf32>
    %c0_4 = arith.constant 0 : index
    %c0_5 = arith.constant 0 : index
    %54 = vector.load %arg5[%c0_4, %c0_5] : memref<2x1xf32, #tpu.memory_space<vmem>>, vector<2x1xf32>
    tpu.vector_store %arg5[%c0_4, %c0_5], %53 {strides = array<i32>} : memref<2x1xf32, #tpu.memory_space<vmem>>, vector<2x1xf32>,
    %c0_6 = arith.constant 0 : index
    %c0_7 = arith.constant 0 : index
    %55 = vector.load %arg1[%c0_6, %c0_7] : memref<2x1xf32, #tpu.memory_space<vmem>>, vector<2x1xf32>
    %cst_8 = arith.constant 5.000000e-01 : f32
    %56 = vector.broadcast %cst_8 : f32 to vector<2x1xf32>
    %57 = arith.divf %56, %55 : vector<2x1xf32>
    %c508_i32 = arith.constant 508 : i32
    %58 = tpu.dynamic_rotate %48 by %c508_i32 dim 1 : vector<2x512xf32>, i32 -> vector<2x512xf32>
    %c4_i32 = arith.constant 4 : i32
    %59 = tpu.dynamic_rotate %48 by %c4_i32 dim 1 : vector<2x512xf32>, i32 -> vector<2x512xf32>
    %60 = arith.subf %58, %59 : vector<2x512xf32>
    %61 = vector.broadcast %57 : vector<2x1xf32> to vector<2x512xf32>
    %62 = arith.mulf %60, %61 : vector<2x512xf32>
    %c0_9 = arith.constant 0 : index
    %c0_10 = arith.constant 0 : index
    %63 = vector.load %arg4[%c0_9, %c0_10] : memref<2x512xf32, #tpu.memory_space<vmem>>, vector<2x512xf32>
    tpu.vector_store %arg4[%c0_9, %c0_10], %62 {strides = array<i32>} : memref<2x512xf32, #tpu.memory_space<vmem>>, vector<2x512xf32>,
    return
  }
  func.func @transform_0(%arg0: i32) -> (i32, i32) {
    %c0_i32 = arith.constant 0 : i32
    %c0_i32_0 = arith.constant 0 : i32
    return %arg0, %c0_i32 : i32, i32
  }
  func.func @transform_1(%arg0: i32) -> (i32, i32) {
    %c0_i32 = arith.constant 0 : i32
    %c0_i32_0 = arith.constant 0 : i32
    return %arg0, %c0_i32 : i32, i32
  }
  func.func @transform_2(%arg0: i32) -> (i32, i32) {
    %c0_i32 = arith.constant 0 : i32
    %c0_i32_0 = arith.constant 0 : i32
    %c0_i32_1 = arith.constant 0 : i32
    return %c0_i32, %c0_i32_0 : i32, i32
  }
  func.func @transform_3(%arg0: i32) -> (i32, i32) {
    %c0_i32 = arith.constant 0 : i32
    %c0_i32_0 = arith.constant 0 : i32
    return %arg0, %c0_i32 : i32, i32
  }
  func.func @transform_4(%arg0: i32) -> (i32, i32) {
    %c0_i32 = arith.constant 0 : i32
    %c0_i32_0 = arith.constant 0 : i32
    return %arg0, %c0_i32 : i32, i32
  }
}

</mosaic_0001>

<llo_original>
// kernel: tpu_custom_call.1
$region0: #{tpu_custom_call.1}
  #allocation0 [shape = 'u32[]', space=smem, size = 0x4, offset = 0x4, fixed_abs, tag = 'smem constant byte address 0x4 - core index']
  #allocation1 [shape = 'u32[144,128]{1,0:T(1,128)}', space=vmem, size = 0x12000, scoped, tag = 'internal scratch']
  %s0 = inlined_call_operand.vmem [shape: f32[2,1], index: 0, kind: input, shape index: {}]
  %s1 = inlined_call_operand.hbm [shape: f32[2,512], index: 1, kind: input, shape index: {}]
  %s2 = inlined_call_operand.hbm [shape: f32[7,512], index: 2, kind: input, shape index: {}]
  %s3 = inlined_call_operand.hbm [shape: f32[2,512], index: 3, kind: output, shape index: {0}]
  %s4 = inlined_call_operand.vmem [shape: f32[2,1], index: 4, kind: output, shape index: {1}]
  %5 = xla_tuple %s3, %s4
  %s6 = sld [smem:[#allocation0]]
  $region38: #{tpu_custom_call.1} parent=0
    _
  %s8 = ssub.s32 1, %s6
  %s9 = scalar_select 0, %s8, %s6
  $region1: #{tpu_custom_call.1} parent=0
    #allocation2 [shape = 'u8[4096]{0}', space=vmem, size = 0x1000, scoped, tag = 'input window, operand 1, single buffered']
    #allocation3 [shape = 's32[1]{0}', space=sflag, size = 0x4, scoped, tag = 'scoped memory for tpu_custom_call.1']
    #allocation4 [shape = 's32[1]{0}', space=sflag, size = 0x4, scoped, tag = 'scoped memory for tpu_custom_call.1']
    #allocation5 [shape = 'u8[16384]{0}', space=vmem, size = 0x4000, scoped, tag = 'input window, operand 2, single buffered']
    #allocation6 [shape = 's32[1]{0}', space=sflag, size = 0x4, scoped, tag = 'scoped memory for tpu_custom_call.1']
    #allocation7 [shape = 'u8[4096]{0}', space=vmem, size = 0x1000, scoped, tag = 'output window, operand 0, single buffered']
    %10 = vsyncpa [#allocation3], 0
    %11 = vsyncpa [#allocation6], 0
    %12 = vsyncpa [#allocation4], 0
    // Predicated region
    $region2: #{tpu_custom_call.1} parent=1 // pred_check
      _
    $region3: #{tpu_custom_call.1} parent=1 // pred_check_branch
      %14 = sbr.rel (0) target = $region5
    $region4: #{tpu_custom_call.1} parent=1 // pred_region
      _
    $region5: #{tpu_custom_call.1} parent=1 // pred_fallthru
      _
    // Predicated region
    $region6: #{tpu_custom_call.1} parent=1 // pred_check
      _
    $region7: #{tpu_custom_call.1} parent=1 // pred_check_branch
      %16 = sbr.rel (0) target = $region9
    $region8: #{tpu_custom_call.1} parent=1 // pred_region
      %s18 = ssub.s32 128, 128
      %19 = vsyncadd [#allocation3], %s18
      %s21 = sshll.u32 [#allocation2], 4
      %s22 = int_to_ptr.vmem [resolvable:$true] %s21
      %24 = dma.hbm_to_vmem [thread:$0]  %s1, 128, %s22, [#allocation3]
    $region9: #{tpu_custom_call.1} parent=1 // pred_fallthru
      _
    // Predicated region
    $region10: #{tpu_custom_call.1} parent=1 // pred_check
      _
    $region11: #{tpu_custom_call.1} parent=1 // pred_check_branch
      %26 = sbr.rel (0) target = $region13
    $region12: #{tpu_custom_call.1} parent=1 // pred_region
      %s28 = ssub.s32 512, 512
      %29 = vsyncadd [#allocation6], %s28
      %s31 = sshll.u32 [#allocation5], 4
      %s32 = int_to_ptr.vmem [resolvable:$true] %s31
      %34 = dma.hbm_to_vmem [thread:$0]  %s2, 512, %s32, [#allocation6]
    $region13: #{tpu_custom_call.1} parent=1 // pred_fallthru
      _
    // Predicated region
    $region14: #{tpu_custom_call.1} parent=1 // pred_check
      _
    $region15: #{tpu_custom_call.1} parent=1 // pred_check_branch
      %36 = sbr.rel (0) target = $region17
    $region16: #{tpu_custom_call.1} parent=1 // pred_region
      %37 = dma.done [#allocation3], 128
    $region17: #{tpu_custom_call.1} parent=1 // pred_fallthru
      _
    // Predicated region
    $region18: #{tpu_custom_call.1} parent=1 // pred_check
      _
    $region19: #{tpu_custom_call.1} parent=1 // pred_check_branch
      %39 = sbr.rel (0) target = $region21
    $region20: #{tpu_custom_call.1} parent=1 // pred_region
      %40 = dma.done [#allocation6], 512
    $region21: #{tpu_custom_call.1} parent=1 // pred_fallthru
      _
    %v41 = vld [vmem:[#allocation2] sm:$0xff]
    %v42 = vld [vmem:[#allocation5] sm:$0x7f]
    %v43 = vld [vmem:[#allocation5 + $0x8] sm:$0x7f]
    %v44 = vld [vmem:[#allocation5 + $0x10] sm:$0x7f]
    %v45 = vld [vmem:[#allocation5 + $0x18] sm:$0x7f]
    %v46 = vlaneseq
    %v47 = vshrl.u32 %v46, 7
    %v48 = vsub.s32 3, %v47
    %v49 = vrot.slane %v42, %v48
    %v50 = vlaneseq
    %v51 = vshrl.u32 %v50, 7
    %v52 = vsub.s32 3, %v51
    %v53 = vrot.slane %v43, %v52
    %v54 = vlaneseq
    %v55 = vshrl.u32 %v54, 7
    %v56 = vsub.s32 3, %v55
    %v57 = vrot.slane %v44, %v56
    %v58 = vlaneseq
    %v59 = vshrl.u32 %v58, 7
    %v60 = vsub.s32 3, %v59
    %v61 = vrot.slane %v45, %v60
    %v63 = vcombine.high %v41, %v41
    %v65 = vunpack.c.l.s4 1983009808
    %v66 = vunpack.c.0.s8 %v65
    %v67 = vlaneseq
    %v68 = vshrl.u32 %v67, 7
    %v69 = vsub.s32 %v66, %v68
    %v70 = vrot.slane %v41, %v69
    %v72 = vunpack.c.l.s4 1983009808
    %v73 = vunpack.c.0.s8 %v72
    %v74 = vlaneseq
    %v75 = vshrl.u32 %v74, 7
    %v76 = vsub.s32 %v73, %v75
    %v77 = vrot.slane %v63, %v76
    %v78 = vcombine.high %v70, %v70
    %v79 = vcombine.high %v77, %v77
    %v84 = vmul.f32 %v49, %v70
    %v85 = vmul.f32 %v53, %v78
    %v86 = vmul.f32 %v57, %v77
    %v87 = vmul.f32 %v61, %v79
    %88 = vrot.lane.b32.xlu0 %v70, 127
    %v89 = vpop.permute.xlu0 %88
    %90 = vrot.lane.b32.xlu0 %v78, 127
    %v91 = vpop.permute.xlu0 %90
    %92 = vrot.lane.b32.xlu0 %v77, 127
    %v93 = vpop.permute.xlu0 %92
    %94 = vrot.lane.b32.xlu0 %v79, 127
    %v95 = vpop.permute.xlu0 %94
    %v96 = vlaneseq
    %v97 = vand.u32 %v96, 127
    %vm98 = vcmp.lt.s32.totalorder %v97, 127
    %v99 = vsel %vm98, %v93, %v95
    %v100 = vsel %vm98, %v91, %v93
    %v101 = vsel %vm98, %v89, %v91
    %v102 = vsel %vm98, %v95, %v89
    %v103 = vlaneseq
    %v104 = vshrl.u32 %v103, 7
    %v105 = vsub.s32 4, %v104
    %v106 = vrot.slane %v42, %v105
    %v107 = vlaneseq
    %v108 = vshrl.u32 %v107, 7
    %v109 = vsub.s32 4, %v108
    %v110 = vrot.slane %v43, %v109
    %v111 = vlaneseq
    %v112 = vshrl.u32 %v111, 7
    %v113 = vsub.s32 4, %v112
    %v114 = vrot.slane %v44, %v113
    %v115 = vlaneseq
    %v116 = vshrl.u32 %v115, 7
    %v117 = vsub.s32 4, %v116
    %v118 = vrot.slane %v45, %v117
    %v119 = vmul.f32 %v106, %v101
    %v120 = vmul.f32 %v110, %v100
    %v121 = vmul.f32 %v114, %v99
    %v122 = vmul.f32 %v118, %v102
    %v123 = vadd.f32 %v84, %v119
    %v124 = vadd.f32 %v85, %v120
    %v125 = vadd.f32 %v86, %v121
    %v126 = vadd.f32 %v87, %v122
    %127 = vrot.lane.b32.xlu0 %v70, 1
    %v128 = vpop.permute.xlu0 %127
    %129 = vrot.lane.b32.xlu0 %v78, 1
    %v130 = vpop.permute.xlu0 %129
    %131 = vrot.lane.b32.xlu0 %v77, 1
    %v132 = vpop.permute.xlu0 %131
    %133 = vrot.lane.b32.xlu0 %v79, 1
    %v134 = vpop.permute.xlu0 %133
    %vm135 = vcmp.lt.s32.totalorder %v97, 1
    %v136 = vsel %vm135, %v132, %v134
    %v137 = vsel %vm135, %v130, %v132
    %v138 = vsel %vm135, %v128, %v130
    %v139 = vsel %vm135, %v134, %v128
    %v140 = vlaneseq
    %v141 = vshrl.u32 %v140, 7
    %v142 = vsub.s32 2, %v141
    %v143 = vrot.slane %v42, %v142
    %v144 = vlaneseq
    %v145 = vshrl.u32 %v144, 7
    %v146 = vsub.s32 2, %v145
    %v147 = vrot.slane %v43, %v146
    %v148 = vlaneseq
    %v149 = vshrl.u32 %v148, 7
    %v150 = vsub.s32 2, %v149
    %v151 = vrot.slane %v44, %v150
    %v152 = vlaneseq
    %v153 = vshrl.u32 %v152, 7
    %v154 = vsub.s32 2, %v153
    %v155 = vrot.slane %v45, %v154
    %v156 = vmul.f32 %v143, %v139
    %v157 = vmul.f32 %v147, %v138
    %v158 = vmul.f32 %v151, %v137
    %v159 = vmul.f32 %v155, %v136
    %v160 = vadd.f32 %v123, %v156
    %v161 = vadd.f32 %v124, %v157
    %v162 = vadd.f32 %v125, %v158
    %v163 = vadd.f32 %v126, %v159
    %164 = vrot.lane.b32.xlu0 %v70, 126
    %v165 = vpop.permute.xlu0 %164
    %166 = vrot.lane.b32.xlu0 %v78, 126
    %v167 = vpop.permute.xlu0 %166
    %168 = vrot.lane.b32.xlu0 %v77, 126
    %v169 = vpop.permute.xlu0 %168
    %170 = vrot.lane.b32.xlu0 %v79, 126
    %v171 = vpop.permute.xlu0 %170
    %vm172 = vcmp.lt.s32.totalorder %v97, 126
    %v173 = vsel %vm172, %v169, %v171
    %v174 = vsel %vm172, %v167, %v169
    %v175 = vsel %vm172, %v165, %v167
    %v176 = vsel %vm172, %v171, %v165
    %v177 = vlaneseq
    %v178 = vshrl.u32 %v177, 7
    %v179 = vsub.s32 5, %v178
    %v180 = vrot.slane %v42, %v179
    %v181 = vlaneseq
    %v182 = vshrl.u32 %v181, 7
    %v183 = vsub.s32 5, %v182
    %v184 = vrot.slane %v43, %v183
    %v185 = vlaneseq
    %v186 = vshrl.u32 %v185, 7
    %v187 = vsub.s32 5, %v186
    %v188 = vrot.slane %v44, %v187
    %v189 = vlaneseq
    %v190 = vshrl.u32 %v189, 7
    %v191 = vsub.s32 5, %v190
    %v192 = vrot.slane %v45, %v191
    %v193 = vmul.f32 %v180, %v175
    %v194 = vmul.f32 %v184, %v174
    %v195 = vmul.f32 %v188, %v173
    %v196 = vmul.f32 %v192, %v176
    %v197 = vadd.f32 %v160, %v193
    %v198 = vadd.f32 %v161, %v194
    %v199 = vadd.f32 %v162, %v195
    %v200 = vadd.f32 %v163, %v196
    %201 = vrot.lane.b32.xlu0 %v70, 2
    %v202 = vpop.permute.xlu0 %201
    %203 = vrot.lane.b32.xlu0 %v78, 2
    %v204 = vpop.permute.xlu0 %203
    %205 = vrot.lane.b32.xlu0 %v77, 2
    %v206 = vpop.permute.xlu0 %205
    %207 = vrot.lane.b32.xlu0 %v79, 2
    %v208 = vpop.permute.xlu0 %207
    %vm209 = vcmp.lt.s32.totalorder %v97, 2
    %v210 = vsel %vm209, %v206, %v208
    %v211 = vsel %vm209, %v204, %v206
    %v212 = vsel %vm209, %v202, %v204
    %v213 = vsel %vm209, %v208, %v202
    %v214 = vlaneseq
    %v215 = vshrl.u32 %v214, 7
    %v216 = vsub.s32 1, %v215
    %v217 = vrot.slane %v42, %v216
    %v218 = vlaneseq
    %v219 = vshrl.u32 %v218, 7
    %v220 = vsub.s32 1, %v219
    %v221 = vrot.slane %v43, %v220
    %v222 = vlaneseq
    %v223 = vshrl.u32 %v222, 7
    %v224 = vsub.s32 1, %v223
    %v225 = vrot.slane %v44, %v224
    %v226 = vlaneseq
    %v227 = vshrl.u32 %v226, 7
    %v228 = vsub.s32 1, %v227
    %v229 = vrot.slane %v45, %v228
    %v230 = vmul.f32 %v217, %v213
    %v231 = vmul.f32 %v221, %v212
    %v232 = vmul.f32 %v225, %v211
    %v233 = vmul.f32 %v229, %v210
    %v234 = vadd.f32 %v197, %v230
    %v235 = vadd.f32 %v198, %v231
    %v236 = vadd.f32 %v199, %v232
    %v237 = vadd.f32 %v200, %v233
    %238 = vrot.lane.b32.xlu0 %v70, 125
    %v239 = vpop.permute.xlu0 %238
    %240 = vrot.lane.b32.xlu0 %v78, 125
    %v241 = vpop.permute.xlu0 %240
    %242 = vrot.lane.b32.xlu0 %v77, 125
    %v243 = vpop.permute.xlu0 %242
    %244 = vrot.lane.b32.xlu0 %v79, 125
    %v245 = vpop.permute.xlu0 %244
    %vm246 = vcmp.lt.s32.totalorder %v97, 125
    %v247 = vsel %vm246, %v243, %v245
    %v248 = vsel %vm246, %v241, %v243
    %v249 = vsel %vm246, %v239, %v241
    %v250 = vsel %vm246, %v245, %v239
    %v251 = vlaneseq
    %v252 = vshrl.u32 %v251, 7
    %v253 = vsub.s32 6, %v252
    %v254 = vrot.slane %v42, %v253
    %v255 = vlaneseq
    %v256 = vshrl.u32 %v255, 7
    %v257 = vsub.s32 6, %v256
    %v258 = vrot.slane %v43, %v257
    %v259 = vlaneseq
    %v260 = vshrl.u32 %v259, 7
    %v261 = vsub.s32 6, %v260
    %v262 = vrot.slane %v44, %v261
    %v263 = vlaneseq
    %v264 = vshrl.u32 %v263, 7
    %v265 = vsub.s32 6, %v264
    %v266 = vrot.slane %v45, %v265
    %v267 = vmul.f32 %v254, %v249
    %v268 = vmul.f32 %v258, %v248
    %v269 = vmul.f32 %v262, %v247
    %v270 = vmul.f32 %v266, %v250
    %v271 = vadd.f32 %v234, %v267
    %v272 = vadd.f32 %v235, %v268
    %v273 = vadd.f32 %v236, %v269
    %v274 = vadd.f32 %v237, %v270
    %275 = vrot.lane.b32.xlu0 %v70, 3
    %v276 = vpop.permute.xlu0 %275
    %277 = vrot.lane.b32.xlu0 %v78, 3
    %v278 = vpop.permute.xlu0 %277
    %279 = vrot.lane.b32.xlu0 %v77, 3
    %v280 = vpop.permute.xlu0 %279
    %281 = vrot.lane.b32.xlu0 %v79, 3
    %v282 = vpop.permute.xlu0 %281
    %vm283 = vcmp.lt.s32.totalorder %v97, 3
    %v284 = vsel %vm283, %v280, %v282
    %v285 = vsel %vm283, %v278, %v280
    %v286 = vsel %vm283, %v276, %v278
    %v287 = vsel %vm283, %v282, %v276
    %v288 = vlaneseq
    %v289 = vshrl.u32 %v288, 7
    %v290 = vsub.s32 0, %v289
    %v291 = vrot.slane %v42, %v290
    %v292 = vlaneseq
    %v293 = vshrl.u32 %v292, 7
    %v294 = vsub.s32 0, %v293
    %v295 = vrot.slane %v43, %v294
    %v296 = vlaneseq
    %v297 = vshrl.u32 %v296, 7
    %v298 = vsub.s32 0, %v297
    %v299 = vrot.slane %v44, %v298
    %v300 = vlaneseq
    %v301 = vshrl.u32 %v300, 7
    %v302 = vsub.s32 0, %v301
    %v303 = vrot.slane %v45, %v302
    %v304 = vmul.f32 %v291, %v287
    %v305 = vmul.f32 %v295, %v286
    %v306 = vmul.f32 %v299, %v285
    %v307 = vmul.f32 %v303, %v284
    %v308 = vadd.f32 %v271, %v304
    %v309 = vadd.f32 %v272, %v305
    %v310 = vadd.f32 %v273, %v306
    %v311 = vadd.f32 %v274, %v307
    %v316 = vcombine.low %v308, %v309
    %v317 = vcombine.low %v310, %v311
    %v319 = vunpack.c.l.s4 1983009808
    %v320 = vunpack.c.0.s8 %v319
    %v321 = vlaneseq
    %v322 = vshrl.u32 %v321, 7
    %v323 = vsub.s32 %v320, %v322
    %v324 = vrot.slane %v316, %v323
    %v326 = vunpack.c.l.s4 1983009808
    %v327 = vunpack.c.0.s8 %v326
    %v328 = vlaneseq
    %v329 = vshrl.u32 %v328, 7
    %v330 = vsub.s32 %v327, %v329
    %v331 = vrot.slane %v317, %v330
    %v332 = vcombine.low %v324, %v331
    %v334 = vmul.f32 %v41, %v332
    %v336 = vcombine.high %v334, %v334
    %v338 = vunpack.c.l.s4 1983009808
    %v339 = vunpack.c.0.s8 %v338
    %v340 = vlaneseq
    %v341 = vshrl.u32 %v340, 7
    %v342 = vsub.s32 %v339, %v341
    %v343 = vrot.slane %v334, %v342
    %v345 = vunpack.c.l.s4 1983009808
    %v346 = vunpack.c.0.s8 %v345
    %v347 = vlaneseq
    %v348 = vshrl.u32 %v347, 7
    %v349 = vsub.s32 %v346, %v348
    %v350 = vrot.slane %v336, %v349
    %v351 = vcombine.high %v343, %v343
    %v352 = vcombine.high %v350, %v350
    %vm357 = vcmask 1041408
    %v358 = vsel %vm357, %v343, 0.0
    %v359 = vsel %vm357, %v351, 0.0
    %v360 = vadd.f32 %v358, %v359
    %v361 = vsel %vm357, %v350, 0.0
    %v362 = vadd.f32 %v360, %v361
    %v363 = vsel %vm357, %v352, 0.0
    %v364 = vadd.f32 %v362, %v363
    %365 = vadd.xlane.f32.xlu0 %v364
    %v366 = vpop.xlane.xlu0 %365
    %v367 = vmul.f32 %v366, 0.5
    %vm368 = vcmask 1024
    %369 = vst.msk [vmem:[%s4] sm:$0x3] %vm368, %v367
    %v370 = vld [vmem:[%s0] sm:$0x3]
    %v371 = vrcp.pop %v370
    %v372 = vmul.f32 0.5, %v371
    %373 = vrot.lane.b32.xlu0 %v308, 124
    %v374 = vpop.permute.xlu0 %373
    %375 = vrot.lane.b32.xlu0 %v309, 124
    %v376 = vpop.permute.xlu0 %375
    %377 = vrot.lane.b32.xlu0 %v310, 124
    %v378 = vpop.permute.xlu0 %377
    %379 = vrot.lane.b32.xlu0 %v311, 124
    %v380 = vpop.permute.xlu0 %379
    %vm381 = vcmp.lt.s32.totalorder %v97, 124
    %v382 = vsel %vm381, %v378, %v380
    %v383 = vsel %vm381, %v376, %v378
    %v384 = vsel %vm381, %v374, %v376
    %v385 = vsel %vm381, %v380, %v374
    %386 = vrot.lane.b32.xlu0 %v308, 4
    %v387 = vpop.permute.xlu0 %386
    %388 = vrot.lane.b32.xlu0 %v309, 4
    %v389 = vpop.permute.xlu0 %388
    %390 = vrot.lane.b32.xlu0 %v310, 4
    %v391 = vpop.permute.xlu0 %390
    %392 = vrot.lane.b32.xlu0 %v311, 4
    %v393 = vpop.permute.xlu0 %392
    %vm394 = vcmp.lt.s32.totalorder %v97, 4
    %v395 = vsel %vm394, %v391, %v393
    %v396 = vsel %vm394, %v389, %v391
    %v397 = vsel %vm394, %v387, %v389
    %v398 = vsel %vm394, %v393, %v387
    %v399 = vsub.f32 %v384, %v398
    %v400 = vsub.f32 %v383, %v397
    %v401 = vsub.f32 %v382, %v396
    %v402 = vsub.f32 %v385, %v395
    %404 = vset.pattern.permute.xlu0 0
    %405 = vperm.xlu0 %404, %v372
    %v406 = vpop.permute.xlu0 %405
    %v408 = vmul.f32 %v399, %v406
    %v409 = vmul.f32 %v400, %v406
    %v410 = vmul.f32 %v401, %v406
    %v411 = vmul.f32 %v402, %v406
    %v416 = vcombine.low %v408, %v409
    %v417 = vcombine.low %v410, %v411
    %v419 = vunpack.c.l.s4 1983009808
    %v420 = vunpack.c.0.s8 %v419
    %v421 = vlaneseq
    %v422 = vshrl.u32 %v421, 7
    %v423 = vsub.s32 %v420, %v422
    %v424 = vrot.slane %v416, %v423
    %v426 = vunpack.c.l.s4 1983009808
    %v427 = vunpack.c.0.s8 %v426
    %v428 = vlaneseq
    %v429 = vshrl.u32 %v428, 7
    %v430 = vsub.s32 %v427, %v429
    %v431 = vrot.slane %v417, %v430
    %v432 = vcombine.low %v424, %v431
    %434 = vst [vmem:[#allocation7] sm:$0xff] %v432
    // Predicated region
    $region22: #{tpu_custom_call.1} parent=1 // pred_check
      _
    $region23: #{tpu_custom_call.1} parent=1 // pred_check_branch
      %436 = sbr.rel (0) target = $region25
    $region24: #{tpu_custom_call.1} parent=1 // pred_region
      %s438 = ssub.s32 128, 128
      %439 = vsyncadd [#allocation4], %s438
      %s441 = sshll.u32 [#allocation7], 4
      %s442 = int_to_ptr.vmem [resolvable:$true] %s441
      %444 = dma.vmem_to_hbm [thread:$0]  %s442, 128, %s3, [#allocation4]
    $region25: #{tpu_custom_call.1} parent=1 // pred_fallthru
      _
    // Predicated region
    $region26: #{tpu_custom_call.1} parent=1 // pred_check
      _
    $region27: #{tpu_custom_call.1} parent=1 // pred_check_branch
      %446 = sbr.rel (0) target = $region29
    $region28: #{tpu_custom_call.1} parent=1 // pred_region
      _
    $region29: #{tpu_custom_call.1} parent=1 // pred_fallthru
      _
    // Predicated region
    $region30: #{tpu_custom_call.1} parent=1 // pred_check
      _
    $region31: #{tpu_custom_call.1} parent=1 // pred_check_branch
      %448 = sbr.rel (0) target = $region33
    $region32: #{tpu_custom_call.1} parent=1 // pred_region
      %449 = dma.done [#allocation4], 128
    $region33: #{tpu_custom_call.1} parent=1 // pred_fallthru
      _
    // Predicated region
    $region34: #{tpu_custom_call.1} parent=1 // pred_check
      _
    $region35: #{tpu_custom_call.1} parent=1 // pred_check_branch
      %451 = sbr.rel (0) target = $region37
    $region36: #{tpu_custom_call.1} parent=1 // pred_region
      _
    $region37: #{tpu_custom_call.1} parent=1 // pred_fallthru
      _
    %452 = vsyncpa [#allocation3], 1
    %453 = vsyncpa [#allocation6], 1
    %454 = vsyncpa [#allocation4], 1

</llo_original>
